<compile_context>
chip_gen: v6e
topology: v6e:2x2x1
jax: 0.10.0
libtpu: 0.0.40
codegen_flags: <defaults>
</compile_context>

<pallas_src>
import functools

import jax
import jax.numpy as jnp
from jax.experimental import pallas as pl
from jax.experimental.pallas import tpu as pltpu


def _make_kernel(n_in, n_out, K, dilation, padding, L, TB, use_downsample):
    """Builds the Pallas kernel body with static shape params closed over."""

    def _causal_taps(v, c):
        # v: (TB, L, c) value -> (TB*L, K*c) im2col matrix of the dilated
        # causal conv taps (left zero padding of `padding` time steps).
        if padding > 0:
            vpad = jnp.concatenate(
                [jnp.zeros((TB, padding, c), jnp.float32), v], axis=1)
        else:
            vpad = v
        taps = jnp.concatenate(
            [vpad[:, j * dilation:j * dilation + L, :] for j in range(K)],
            axis=-1)                                    # (TB, L, K*c)
        return taps.reshape(TB * L, K * c)

    def kernel(x_ref, w1_ref, b1_ref, w2_ref, b2_ref, *rest):
        # x_ref : (TB, L, n_in)  f32
        # w1_ref: (K*n_in,  n_out) bf16   b1_ref: (1, n_out) f32
        # w2_ref: (K*n_out, n_out) bf16   b2_ref: (1, n_out) f32
        # [wd_ref: (n_in, n_out) bf16, bd_ref: (1, n_out) f32]   (optional)
        # o_ref : (TB, L, n_out) f32
        if use_downsample:
            wd_ref, bd_ref, o_ref = rest
        else:
            (o_ref,) = rest

        x = x_ref[...]                                  # (TB, L, n_in) f32

        # ---- conv1 (dilated causal) as one MXU matmul + bias + ReLU ----
        a1 = _causal_taps(x, n_in).astype(jnp.bfloat16)
        h1 = jnp.dot(a1, w1_ref[...], preferred_element_type=jnp.float32)
        h1 = jnp.maximum(h1 + b1_ref[...], 0.0)         # (TB*L, n_out) f32
        # dropout1: identity (eval mode)

        # ---- conv2: taps built from the value (no scratch round-trip) ----
        a2 = _causal_taps(h1.reshape(TB, L, n_out), n_out).astype(jnp.bfloat16)
        h2 = jnp.dot(a2, w2_ref[...], preferred_element_type=jnp.float32)
        h2 = jnp.maximum(h2 + b2_ref[...], 0.0)         # (TB*L, n_out) f32
        # dropout2: identity (eval mode)

        # ---- residual branch ----
        xin = x.reshape(TB * L, n_in)
        if use_downsample:
            res = jnp.dot(xin.astype(jnp.bfloat16), wd_ref[...],
                          preferred_element_type=jnp.float32) + bd_ref[...]
        else:
            res = xin                                   # exact f32 skip

        y = jnp.maximum(h2 + res, 0.0)
        # NOTE: lane-dense for production n_out >= 128; kept as (TB, L, n_out)
        # for lowering safety at small n_out.
        o_ref[...] = y.reshape(TB, L, n_out)

    return kernel


def _pick_block_batch(N, L, n_in, n_out, K, budget_bytes=2 << 20):
    """Largest divisor of N whose per-step working set stays within budget."""
    best = 1
    for tb in range(1, N + 1):
        if N % tb:
            continue
        blk = tb * L * (n_in + n_out) * 4            # x block + out block (f32)
        blk += tb * L * K * (n_in + n_out) * 2       # bf16 im2col intermediates
        if blk <= budget_bytes:
            best = tb
    return best


def temporal_block_forward(x_ncl, w1, b1, w2, b2, wd, bd,
                           *, kernel_size, stride, dilation, padding,
                           block_batch=None):
    """x_ncl: (N, C_in, L) float32.  Weights in PyTorch layout:
       w1: (C_out, C_in, K), w2: (C_out, C_out, K), wd: (C_out, C_in) or None."""
    assert stride == 1, "TCN TemporalBlock uses stride=1"
    assert padding == dilation * (kernel_size - 1), \
        "residual add requires the causal setting padding = dilation*(K-1)"

    N, n_in, L = x_ncl.shape
    n_out = w1.shape[0]
    K = kernel_size
    use_downsample = wd is not None
    if not use_downsample:
        assert n_in == n_out, "identity residual requires n_in == n_out"

    TB = block_batch if block_batch is not None else _pick_block_batch(
        N, L, n_in, n_out, K)
    assert N % TB == 0

    kernel = _make_kernel(n_in, n_out, K, dilation, padding, L, TB,
                          use_downsample)

    # ---- host-side glue: layout change + weight packing (bf16 for the MXU) ----
    x_nlc = jnp.transpose(x_ncl, (0, 2, 1)).astype(jnp.float32)      # (N, L, C_in)
    # (C_out, C_in, K) -> (K*C_in, C_out) matching the im2col tap/channel order.
    w1_mat = jnp.transpose(w1, (2, 1, 0)).reshape(K * n_in, n_out).astype(jnp.bfloat16)
    w2_mat = jnp.transpose(w2, (2, 1, 0)).reshape(K * n_out, n_out).astype(jnp.bfloat16)
    b1_k = b1.reshape(1, n_out).astype(jnp.float32)
    b2_k = b2.reshape(1, n_out).astype(jnp.float32)

    in_specs = [
        pl.BlockSpec((TB, L, n_in), lambda n: (n, 0, 0)),
        pl.BlockSpec((K * n_in, n_out), lambda n: (0, 0)),
        pl.BlockSpec((1, n_out), lambda n: (0, 0)),
        pl.BlockSpec((K * n_out, n_out), lambda n: (0, 0)),
        pl.BlockSpec((1, n_out), lambda n: (0, 0)),
    ]
    args = [x_nlc, w1_mat, b1_k, w2_mat, b2_k]
    if use_downsample:
        wd_mat = jnp.transpose(wd, (1, 0)).astype(jnp.bfloat16)      # (C_in, C_out)
        bd_k = bd.reshape(1, n_out).astype(jnp.float32)
        in_specs += [pl.BlockSpec((n_in, n_out), lambda n: (0, 0)),
                     pl.BlockSpec((1, n_out), lambda n: (0, 0))]
        args += [wd_mat, bd_k]

    grid_spec = pltpu.PrefetchScalarGridSpec(
        num_scalar_prefetch=0,
        grid=(N // TB,),
        in_specs=in_specs,
        out_specs=pl.BlockSpec((TB, L, n_out), lambda n: (n, 0, 0)),
    )

    out_nlc = pl.pallas_call(
        kernel,
        out_shape=jax.ShapeDtypeStruct((N, L, n_out), jnp.float32),
        grid_spec=grid_spec,
        compiler_params=pltpu.CompilerParams(
            dimension_semantics=("parallel",),          # batch rows independent
            vmem_limit_bytes=32 * 1024 * 1024),
    )(*args)

    return jnp.transpose(out_nlc, (0, 2, 1))                         # (N, C_out, L)


# -------------------- pure-JAX reference (for self-check) --------------------
def _ref_conv1d(x, w, b, padding, dilation):
    y = jax.lax.conv_general_dilated(
        x, w, window_strides=(1,), padding=[(padding, padding)],
        rhs_dilation=(dilation,), dimension_numbers=("NCH", "OIH", "NCH"))
    return y + b[None, :, None]


def _ref_forward(x, w1, b1, w2, b2, wd, bd, padding, dilation):
    h = _ref_conv1d(x, w1, b1, padding, dilation)[:, :, :-padding]
    h = jnp.maximum(h, 0.0)
    h = _ref_conv1d(h, w2, b2, padding, dilation)[:, :, :-padding]
    h = jnp.maximum(h, 0.0)
    res = x if wd is None else _ref_conv1d(x, wd[:, :, None], bd, 0, 1)
    return jnp.maximum(h + res, 0.0)


def _weight_norm(v, g):
    # weight_norm with default dim=0: W[o] = g[o] * v[o] / ||v[o]||_F
    norm = jnp.sqrt(jnp.sum(v * v, axis=tuple(range(1, v.ndim)), keepdims=True))
    return g.reshape((-1,) + (1,) * (v.ndim - 1)) * v / norm


if __name__ == "__main__":
    key = jax.random.PRNGKey(0)
    ks = jax.random.split(key, 12)

    # Module hyper-params (standard TCN block)
    kernel_size, stride, dilation = 3, 1, 2
    padding = (kernel_size - 1) * dilation            # = 4
    N, L = 2, 16
    fwd = functools.partial(temporal_block_forward,
                            kernel_size=kernel_size, stride=stride,
                            dilation=dilation, padding=padding)

    # ---- case 1: n_in != n_out (downsample 1x1 conv residual) ----
    n_inputs, n_outputs = 4, 8
    x = jax.random.normal(ks[0], (N, n_inputs, L), dtype=jnp.float32)

    v1 = 0.01 * jax.random.normal(ks[1], (n_outputs, n_inputs, kernel_size), jnp.float32)
    w1 = _weight_norm(v1, jnp.sqrt(jnp.sum(v1 * v1, axis=(1, 2))))
    b1 = 0.01 * jax.random.normal(ks[2], (n_outputs,), jnp.float32)
    v2 = 0.01 * jax.random.normal(ks[3], (n_outputs, n_outputs, kernel_size), jnp.float32)
    w2 = _weight_norm(v2, jnp.sqrt(jnp.sum(v2 * v2, axis=(1, 2))))
    b2 = 0.01 * jax.random.normal(ks[4], (n_outputs,), jnp.float32)
    wd = 0.01 * jax.random.normal(ks[5], (n_outputs, n_inputs), jnp.float32)   # 1x1 conv
    bd = 0.01 * jax.random.normal(ks[6], (n_outputs,), jnp.float32)

    out = jax.block_until_ready(jax.jit(fwd)(x, w1, b1, w2, b2, wd, bd))
    ref = _ref_forward(x, w1, b1, w2, b2, wd, bd, padding, dilation)
    assert out.shape == (N, n_outputs, L), out.shape
    assert jnp.allclose(out, ref, atol=2e-3, rtol=2e-2), \
        float(jnp.max(jnp.abs(out - ref)))

    # ---- case 2: n_in == n_out (identity residual, downsample args dropped) ----
    n_ch = 8
    x2 = jax.random.normal(ks[7], (N, n_ch, L), dtype=jnp.float32)
    v1b = 0.01 * jax.random.normal(ks[8], (n_ch, n_ch, kernel_size), jnp.float32)
    w1b = _weight_norm(v1b, jnp.sqrt(jnp.sum(v1b * v1b, axis=(1, 2))))
    b1b = 0.01 * jax.random.normal(ks[9], (n_ch,), jnp.float32)
    v2b = 0.01 * jax.random.normal(ks[10], (n_ch, n_ch, kernel_size), jnp.float32)
    w2b = _weight_norm(v2b, jnp.sqrt(jnp.sum(v2b * v2b, axis=(1, 2))))
    b2b = 0.01 * jax.random.normal(ks[11], (n_ch,), jnp.float32)

    out2 = jax.block_until_ready(jax.jit(fwd)(x2, w1b, b1b, w2b, b2b, None, None))
    ref2 = _ref_forward(x2, w1b, b1b, w2b, b2b, None, None, padding, dilation)
    assert out2.shape == (N, n_ch, L), out2.shape
    assert jnp.allclose(out2, ref2, atol=2e-3, rtol=2e-2), \
        float(jnp.max(jnp.abs(out2 - ref2)))

    print("KERNEL_OK")
</pallas_src>

<mosaic_0001>
module attributes {stable_mosaic.version = 11 : i64} {
  func.func @kernel(%arg0: i32, %arg1: memref<2x16x4xf32, #tpu.memory_space<vmem>>, %arg2: memref<12x8xbf16, #tpu.memory_space<vmem>>, %arg3: memref<1x8xf32, #tpu.memory_space<vmem>>, %arg4: memref<24x8xbf16, #tpu.memory_space<vmem>>, %arg5: memref<1x8xf32, #tpu.memory_space<vmem>>, %arg6: memref<4x8xbf16, #tpu.memory_space<vmem>>, %arg7: memref<1x8xf32, #tpu.memory_space<vmem>>, %arg8: memref<2x16x8xf32, #tpu.memory_space<vmem>>) attributes {dimension_semantics = [#tpu.dimension_semantics<parallel>], iteration_bounds = array<i64: 1>, scalar_prefetch = 0 : i64, scratch_operands = 0 : i64, tpu.core_type = #tpu.core_type<tc>, window_params = [{transform_indices = @transform_0, window_bounds = array<i64: 2, 16, 4>}, {pipeline_mode = #tpu.pipeline_mode<synchronous>, transform_indices = @transform_1, window_bounds = array<i64: 12, 8>}, {pipeline_mode = #tpu.pipeline_mode<synchronous>, transform_indices = @transform_2, window_bounds = array<i64: 1, 8>}, {pipeline_mode = #tpu.pipeline_mode<synchronous>, transform_indices = @transform_3, window_bounds = array<i64: 24, 8>}, {pipeline_mode = #tpu.pipeline_mode<synchronous>, transform_indices = @transform_4, window_bounds = array<i64: 1, 8>}, {pipeline_mode = #tpu.pipeline_mode<synchronous>, transform_indices = @transform_5, window_bounds = array<i64: 4, 8>}, {pipeline_mode = #tpu.pipeline_mode<synchronous>, transform_indices = @transform_6, window_bounds = array<i64: 1, 8>}, {transform_indices = @transform_7, window_bounds = array<i64: 2, 16, 8>}]} {
    %c0 = arith.constant 0 : index
    %c0_0 = arith.constant 0 : index
    %c0_1 = arith.constant 0 : index
    %0 = vector.load %arg1[%c0, %c0_0, %c0_1] : memref<2x16x4xf32, #tpu.memory_space<vmem>>, vector<2x16x4xf32>
    %cst = arith.constant 0.000000e+00 : f32
    %1 = vector.broadcast %cst : f32 to vector<2x4x4xf32>
    %2 = tpu.concatenate %1, %0 in 1 : vector<2x4x4xf32>, vector<2x16x4xf32> -> vector<2x20x4xf32>
    %3 = vector.extract_strided_slice %2 {offsets = [0, 0, 0], sizes = [2, 16, 4], strides = [1, 1, 1]} : vector<2x20x4xf32> to vector<2x16x4xf32>
    %4 = vector.extract_strided_slice %2 {offsets = [0, 2, 0], sizes = [2, 16, 4], strides = [1, 1, 1]} : vector<2x20x4xf32> to vector<2x16x4xf32>
    %5 = vector.extract_strided_slice %2 {offsets = [0, 4, 0], sizes = [2, 16, 4], strides = [1, 1, 1]} : vector<2x20x4xf32> to vector<2x16x4xf32>
    %6 = tpu.concatenate %3, %4, %5 in 2 : vector<2x16x4xf32>, vector<2x16x4xf32>, vector<2x16x4xf32> -> vector<2x16x12xf32>
    %7 = vector.shape_cast %6 : vector<2x16x12xf32> to vector<32x12xf32>
    %8 = arith.truncf %7 : vector<32x12xf32> to vector<32x12xbf16>
    %c0_2 = arith.constant 0 : index
    %c0_3 = arith.constant 0 : index
    %9 = vector.load %arg2[%c0_2, %c0_3] : memref<12x8xbf16, #tpu.memory_space<vmem>>, vector<12x8xbf16>
    %cst_4 = arith.constant dense<0.000000e+00> : vector<32x8xf32>
    %10 = tpu.matmul %8, %9, %cst_4 {dimension_numbers = #tpu.dot_dimension_numbers<[1], [0], [0], [1], [0, 0, 1, 1], [], []>} : vector<32x12xbf16>, vector<12x8xbf16>, vector<32x8xf32> -> vector<32x8xf32>
    %c0_5 = arith.constant 0 : index
    %c0_6 = arith.constant 0 : index
    %11 = vector.load %arg3[%c0_5, %c0_6] : memref<1x8xf32, #tpu.memory_space<vmem>>, vector<1x8xf32>
    %12 = vector.broadcast %11 : vector<1x8xf32> to vector<32x8xf32>
    %13 = arith.addf %10, %12 : vector<32x8xf32>
    %cst_7 = arith.constant 0.000000e+00 : f32
    %14 = vector.broadcast %cst_7 : f32 to vector<32x8xf32>
    %15 = arith.maximumf %13, %14 : vector<32x8xf32>
    %16 = vector.shape_cast %15 : vector<32x8xf32> to vector<2x16x8xf32>
    %cst_8 = arith.constant 0.000000e+00 : f32
    %17 = vector.broadcast %cst_8 : f32 to vector<2x4x8xf32>
    %18 = tpu.concatenate %17, %16 in 1 : vector<2x4x8xf32>, vector<2x16x8xf32> -> vector<2x20x8xf32>
    %19 = vector.extract_strided_slice %18 {offsets = [0, 0, 0], sizes = [2, 16, 8], strides = [1, 1, 1]} : vector<2x20x8xf32> to vector<2x16x8xf32>
    %20 = vector.extract_strided_slice %18 {offsets = [0, 2, 0], sizes = [2, 16, 8], strides = [1, 1, 1]} : vector<2x20x8xf32> to vector<2x16x8xf32>
    %21 = vector.extract_strided_slice %18 {offsets = [0, 4, 0], sizes = [2, 16, 8], strides = [1, 1, 1]} : vector<2x20x8xf32> to vector<2x16x8xf32>
    %22 = tpu.concatenate %19, %20, %21 in 2 : vector<2x16x8xf32>, vector<2x16x8xf32>, vector<2x16x8xf32> -> vector<2x16x24xf32>
    %23 = vector.shape_cast %22 : vector<2x16x24xf32> to vector<32x24xf32>
    %24 = arith.truncf %23 : vector<32x24xf32> to vector<32x24xbf16>
    %c0_9 = arith.constant 0 : index
    %c0_10 = arith.constant 0 : index
    %25 = vector.load %arg4[%c0_9, %c0_10] : memref<24x8xbf16, #tpu.memory_space<vmem>>, vector<24x8xbf16>
    %cst_11 = arith.constant dense<0.000000e+00> : vector<32x8xf32>
    %26 = tpu.matmul %24, %25, %cst_11 {dimension_numbers = #tpu.dot_dimension_numbers<[1], [0], [0], [1], [0, 0, 1, 1], [], []>} : vector<32x24xbf16>, vector<24x8xbf16>, vector<32x8xf32> -> vector<32x8xf32>
    %c0_12 = arith.constant 0 : index
    %c0_13 = arith.constant 0 : index
    %27 = vector.load %arg5[%c0_12, %c0_13] : memref<1x8xf32, #tpu.memory_space<vmem>>, vector<1x8xf32>
    %28 = vector.broadcast %27 : vector<1x8xf32> to vector<32x8xf32>
    %29 = arith.addf %26, %28 : vector<32x8xf32>
    %cst_14 = arith.constant 0.000000e+00 : f32
    %30 = vector.broadcast %cst_14 : f32 to vector<32x8xf32>
    %31 = arith.maximumf %29, %30 : vector<32x8xf32>
    %32 = vector.shape_cast %0 : vector<2x16x4xf32> to vector<32x4xf32>
    %33 = arith.truncf %32 : vector<32x4xf32> to vector<32x4xbf16>
    %c0_15 = arith.constant 0 : index
    %c0_16 = arith.constant 0 : index
    %34 = vector.load %arg6[%c0_15, %c0_16] : memref<4x8xbf16, #tpu.memory_space<vmem>>, vector<4x8xbf16>
    %cst_17 = arith.constant dense<0.000000e+00> : vector<32x8xf32>
    %35 = tpu.matmul %33, %34, %cst_17 {dimension_numbers = #tpu.dot_dimension_numbers<[1], [0], [0], [1], [0, 0, 1, 1], [], []>} : vector<32x4xbf16>, vector<4x8xbf16>, vector<32x8xf32> -> vector<32x8xf32>
    %c0_18 = arith.constant 0 : index
    %c0_19 = arith.constant 0 : index
    %36 = vector.load %arg7[%c0_18, %c0_19] : memref<1x8xf32, #tpu.memory_space<vmem>>, vector<1x8xf32>
    %37 = vector.broadcast %36 : vector<1x8xf32> to vector<32x8xf32>
    %38 = arith.addf %35, %37 : vector<32x8xf32>
    %39 = arith.addf %31, %38 : vector<32x8xf32>
    %cst_20 = arith.constant 0.000000e+00 : f32
    %40 = vector.broadcast %cst_20 : f32 to vector<32x8xf32>
    %41 = arith.maximumf %39, %40 : vector<32x8xf32>
    %42 = vector.shape_cast %41 : vector<32x8xf32> to vector<2x16x8xf32>
    %c0_21 = arith.constant 0 : index
    %c0_22 = arith.constant 0 : index
    %c0_23 = arith.constant 0 : index
    %43 = vector.load %arg8[%c0_21, %c0_22, %c0_23] : memref<2x16x8xf32, #tpu.memory_space<vmem>>, vector<2x16x8xf32>
    tpu.vector_store %arg8[%c0_21, %c0_22, %c0_23], %42 {strides = array<i32>} : memref<2x16x8xf32, #tpu.memory_space<vmem>>, vector<2x16x8xf32>,
    return
  }
  func.func @transform_0(%arg0: i32) -> (i32, i32, i32) {
    %c0_i32 = arith.constant 0 : i32
    %c0_i32_0 = arith.constant 0 : i32
    %c0_i32_1 = arith.constant 0 : i32
    return %arg0, %c0_i32, %c0_i32_0 : i32, i32, i32
  }
  func.func @transform_1(%arg0: i32) -> (i32, i32) {
    %c0_i32 = arith.constant 0 : i32
    %c0_i32_0 = arith.constant 0 : i32
    %c0_i32_1 = arith.constant 0 : i32
    return %c0_i32, %c0_i32_0 : i32, i32
  }
  func.func @transform_2(%arg0: i32) -> (i32, i32) {
    %c0_i32 = arith.constant 0 : i32
    %c0_i32_0 = arith.constant 0 : i32
    %c0_i32_1 = arith.constant 0 : i32
    return %c0_i32, %c0_i32_0 : i32, i32
  }
  func.func @transform_3(%arg0: i32) -> (i32, i32) {
    %c0_i32 = arith.constant 0 : i32
    %c0_i32_0 = arith.constant 0 : i32
    %c0_i32_1 = arith.constant 0 : i32
    return %c0_i32, %c0_i32_0 : i32, i32
  }
  func.func @transform_4(%arg0: i32) -> (i32, i32) {
    %c0_i32 = arith.constant 0 : i32
    %c0_i32_0 = arith.constant 0 : i32
    %c0_i32_1 = arith.constant 0 : i32
    return %c0_i32, %c0_i32_0 : i32, i32
  }
  func.func @transform_5(%arg0: i32) -> (i32, i32) {
    %c0_i32 = arith.constant 0 : i32
    %c0_i32_0 = arith.constant 0 : i32
    %c0_i32_1 = arith.constant 0 : i32
    return %c0_i32, %c0_i32_0 : i32, i32
  }
  func.func @transform_6(%arg0: i32) -> (i32, i32) {
    %c0_i32 = arith.constant 0 : i32
    %c0_i32_0 = arith.constant 0 : i32
    %c0_i32_1 = arith.constant 0 : i32
    return %c0_i32, %c0_i32_0 : i32, i32
  }
  func.func @transform_7(%arg0: i32) -> (i32, i32, i32) {
    %c0_i32 = arith.constant 0 : i32
    %c0_i32_0 = arith.constant 0 : i32
    %c0_i32_1 = arith.constant 0 : i32
    return %arg0, %c0_i32, %c0_i32_0 : i32, i32, i32
  }
}

</mosaic_0001>

<llo_original>
// kernel: temporal_block_forward.1
$region0: #{temporal_block_forward.1}
  #allocation0 [shape = 'u32[]', space=smem, size = 0x4, offset = 0x4, fixed_abs, tag = 'smem constant byte address 0x4 - core index']
  #allocation1 [shape = 'u32[144,128]{1,0:T(1,128)}', space=vmem, size = 0x12000, scoped, tag = 'internal scratch']
  %s0 = inlined_call_operand.vmem [shape: f32[2,16,4], index: 0, kind: input, shape index: {}]
  %s1 = inlined_call_operand.vmem [shape: bf16[12,8], index: 1, kind: input, shape index: {}]
  %s2 = inlined_call_operand.vmem [shape: f32[1,8], index: 2, kind: input, shape index: {}]
  %s3 = inlined_call_operand.vmem [shape: bf16[24,8], index: 3, kind: input, shape index: {}]
  %s4 = inlined_call_operand.vmem [shape: f32[1,8], index: 4, kind: input, shape index: {}]
  %s5 = inlined_call_operand.vmem [shape: bf16[4,8], index: 5, kind: input, shape index: {}]
  %s6 = inlined_call_operand.vmem [shape: f32[1,8], index: 6, kind: input, shape index: {}]
  %s7 = inlined_call_operand.vmem [shape: f32[2,16,8], index: 7, kind: output, shape index: {}]
  %s8 = sld [smem:[#allocation0]]
  $region38: #{temporal_block_forward.1} parent=0
    _
  %s10 = ssub.s32 1, %s8
  %s11 = scalar_select 0, %s10, %s8
  // Predicated region
  $region2: #{temporal_block_forward.1} parent=0 // pred_check
    _
  $region3: #{temporal_block_forward.1} parent=0 // pred_check_branch
    %13 = sbr.rel (0) target = $region5
  $region4: #{temporal_block_forward.1} parent=0 // pred_region
    _
  $region5: #{temporal_block_forward.1} parent=0 // pred_fallthru
    _
  // Predicated region
  $region6: #{temporal_block_forward.1} parent=0 // pred_check
    _
  $region7: #{temporal_block_forward.1} parent=0 // pred_check_branch
    %15 = sbr.rel (0) target = $region9
  $region8: #{temporal_block_forward.1} parent=0 // pred_region
    _
  $region9: #{temporal_block_forward.1} parent=0 // pred_fallthru
    _
  // Predicated region
  $region10: #{temporal_block_forward.1} parent=0 // pred_check
    _
  $region11: #{temporal_block_forward.1} parent=0 // pred_check_branch
    %17 = sbr.rel (0) target = $region13
  $region12: #{temporal_block_forward.1} parent=0 // pred_region
    _
  $region13: #{temporal_block_forward.1} parent=0 // pred_fallthru
    _
  // Predicated region
  $region14: #{temporal_block_forward.1} parent=0 // pred_check
    _
  $region15: #{temporal_block_forward.1} parent=0 // pred_check_branch
    %19 = sbr.rel (0) target = $region17
  $region16: #{temporal_block_forward.1} parent=0 // pred_region
    _
  $region17: #{temporal_block_forward.1} parent=0 // pred_fallthru
    _
  // Predicated region
  $region18: #{temporal_block_forward.1} parent=0 // pred_check
    _
  $region19: #{temporal_block_forward.1} parent=0 // pred_check_branch
    %21 = sbr.rel (0) target = $region21
  $region20: #{temporal_block_forward.1} parent=0 // pred_region
    _
  $region21: #{temporal_block_forward.1} parent=0 // pred_fallthru
    _
  // Predicated region
  $region22: #{temporal_block_forward.1} parent=0 // pred_check
    _
  $region23: #{temporal_block_forward.1} parent=0 // pred_check_branch
    %23 = sbr.rel (0) target = $region25
  $region24: #{temporal_block_forward.1} parent=0 // pred_region
    _
  $region25: #{temporal_block_forward.1} parent=0 // pred_fallthru
    _
  // Predicated region
  $region26: #{temporal_block_forward.1} parent=0 // pred_check
    _
  $region27: #{temporal_block_forward.1} parent=0 // pred_check_branch
    %25 = sbr.rel (0) target = $region29
  $region28: #{temporal_block_forward.1} parent=0 // pred_region
    _
  $region29: #{temporal_block_forward.1} parent=0 // pred_fallthru
    _
  %v27 = vld [vmem:[%s0] sm:$0xff]
  %v28 = vld [vmem:[%s0 + $0x8] sm:$0xff]
  %v29 = vld [vmem:[%s0 + $0x10] sm:$0xff]
  %v30 = vld [vmem:[%s0 + $0x18] sm:$0xff]
  %vm35 = vcmask 1043456
  %v36 = vrot.slane %v27, 4
  %v37 = vrot.slane %v28, 4
  %v38 = vsel %vm35, %v36, %v37
  %v39 = vrot.slane %v29, 4
  %v40 = vrot.slane %v30, 4
  %v41 = vsel %vm35, %v39, %v40
  %v46 = vsel %vm35, 0.0, %v36
  %v47 = vsel %vm35, 0.0, %v39
  %vm50 = vcmask 1045504
  %v51 = vrot.slane %v46, 2
  %v52 = vrot.slane %v38, 2
  %v53 = vsel %vm50, %v51, %v52
  %v54 = vrot.slane %v37, 2
  %v55 = vsel %vm50, %v52, %v54
  %v56 = vrot.slane %v47, 2
  %v57 = vrot.slane %v41, 2
  %v58 = vsel %vm50, %v56, %v57
  %v59 = vrot.slane %v40, 2
  %v60 = vsel %vm50, %v57, %v59
  %61 = vrot.lane.b32.xlu0 %v53, 4
  %v62 = vpop.permute.xlu0 %61
  %63 = vrot.lane.b32.xlu0 %v55, 4
  %v64 = vpop.permute.xlu0 %63
  %65 = vrot.lane.b32.xlu0 %v58, 4
  %v66 = vpop.permute.xlu0 %65
  %67 = vrot.lane.b32.xlu0 %v60, 4
  %v68 = vpop.permute.xlu0 %67
  %v73 = vrot.slane %v46, 4
  %v74 = vrot.slane %v38, 4
  %v75 = vsel %vm35, %v73, %v74
  %v76 = vrot.slane %v37, 4
  %v77 = vsel %vm35, %v74, %v76
  %v78 = vrot.slane %v47, 4
  %v79 = vrot.slane %v41, 4
  %v80 = vsel %vm35, %v78, %v79
  %v81 = vrot.slane %v40, 4
  %v82 = vsel %vm35, %v79, %v81
  %83 = vrot.lane.b32.xlu0 %v75, 8
  %v84 = vpop.permute.xlu0 %83
  %85 = vrot.lane.b32.xlu0 %v77, 8
  %v86 = vpop.permute.xlu0 %85
  %87 = vrot.lane.b32.xlu0 %v80, 8
  %v88 = vpop.permute.xlu0 %87
  %89 = vrot.lane.b32.xlu0 %v82, 8
  %v90 = vpop.permute.xlu0 %89
  %vm95 = vcmask 31744
  %v96 = vsel %vm95, %v46, %v62
  %v97 = vsel %vm95, %v38, %v64
  %v98 = vsel %vm95, %v47, %v66
  %v99 = vsel %vm95, %v41, %v68
  %vm100 = vcmask 64512
  %v101 = vsel %vm100, %v96, %v84
  %v102 = vsel %vm100, %v97, %v86
  %v103 = vsel %vm100, %v98, %v88
  %v104 = vsel %vm100, %v99, %v90
  %v105 = vpack.c.bf16 %v102, %v101
  %v106 = vpack.c.bf16 %v104, %v103
  %v107 = vld [vmem:[%s1] sm:$0xf]
  %v108 = vld [vmem:[%s1 + $0x4] sm:$0x3]
  %v109 = vld [vmem:[%s2] sm:$0x1]
  %v111 = vlaneseq
  %v112 = vshrl.u32 %v111, 7
  %v113 = vsub.s32 0, %v112
  %v114 = vrot.slane %v109, %v113
  %v118 = vunpack.c.l.b16 %v107
  %v119 = vunpack.c.l.b16 %v108
  %v120 = vpack.c.b16 %v119, %v118
  %vm121 = vcmask 97280
  %v123 = vsel %vm121, %v105, 0
  %v126 = vsel %vm121, %v106, 0
  %v129 = vsel %vm50, %v120, 0
  %131 = vmatprep.subr.bf16.mxu0 0
  %132 = vmatpush1.bf16.msra.mxu0 0
  %133 = vmatprep.subr.bf16.mxu0 0
  %134 = vmatpush1.bf16.msra.mxu0 0
  %135 = vmatprep.subr.bf16.mxu0 0
  %136 = vmatpush1.bf16.msra.mxu0 0
  %137 = vmatprep.subr.bf16.mxu0 0
  %138 = vmatpush1.bf16.msra.mxu0 0
  %139 = vmatprep.subr.bf16.mxu0 0
  %140 = vmatpush1.bf16.msra.mxu0 0
  %141 = vmatprep.subr.bf16.mxu0 0
  %142 = vmatpush1.bf16.msra.mxu0 0
  %143 = vmatprep.subr.bf16.mxu0 0
  %144 = vmatpush1.bf16.msra.mxu0 0
  %145 = vmatprep.subr.bf16.mxu0 0
  %146 = vmatpush1.bf16.msra.mxu0 %v129
  %147 = vmatprep.subr.bf16.mxu0 0
  %148 = vmatpush2.bf16.msra.mxu0 0
  %149 = vmatprep.subr.bf16.mxu0 0
  %150 = vmatpush2.bf16.msra.mxu0 0
  %151 = vmatprep.subr.bf16.mxu0 0
  %152 = vmatpush2.bf16.msra.mxu0 0
  %153 = vmatprep.subr.bf16.mxu0 0
  %154 = vmatpush2.bf16.msra.mxu0 0
  %155 = vmatprep.subr.bf16.mxu0 0
  %156 = vmatpush2.bf16.msra.mxu0 0
  %157 = vmatprep.subr.bf16.mxu0 0
  %158 = vmatpush2.bf16.msra.mxu0 0
  %159 = vmatprep.subr.bf16.mxu0 0
  %160 = vmatpush2.bf16.msra.mxu0 0
  %161 = vmatprep.subr.bf16.mxu0 0
  %162 = vmatpush2.bf16.msra.mxu0 0
  %163 = vmatprep.mubr.bf16.mxu0 0
  %164 = vmatmul.mubr.bf16.gmra.mxu0 %v123
  %v165 = vpop.f32.mrf.mxu0
  %v166 = vadd.f32 %v114, %v165
  %v167 = vpop.f32.mrf.mxu0
  %v168 = vpop.f32.mrf.mxu0
  %v169 = vadd.f32 %v114, %v168
  %v170 = vpop.f32.mrf.mxu0
  %171 = vmatprep.mubr.bf16.mxu0 0
  %172 = vmatmul.mubr.bf16.gmra.mxu0 %v126
  %v173 = vpop.f32.mrf.mxu0
  %v174 = vadd.f32 %v114, %v173
  %v175 = vpop.f32.mrf.mxu0
  %v176 = vpop.f32.mrf.mxu0
  %v177 = vadd.f32 %v114, %v176
  %v178 = vpop.f32.mrf.mxu0
  %179 = vdwg.mxu0
  %v180 = vmax.f32 %v166, 0.0
  %v181 = vmax.f32 %v169, 0.0
  %v182 = vmax.f32 %v174, 0.0
  %v183 = vmax.f32 %v177, 0.0
  %v188 = vrot.slane %v180, 4
  %v189 = vrot.slane %v181, 4
  %v190 = vsel %vm35, %v188, %v189
  %v191 = vrot.slane %v182, 4
  %v192 = vrot.slane %v183, 4
  %v193 = vsel %vm35, %v191, %v192
  %v198 = vsel %vm35, 0.0, %v188
  %v199 = vsel %vm35, 0.0, %v191
  %v202 = vrot.slane %v198, 2
  %v203 = vrot.slane %v190, 2
  %v204 = vsel %vm50, %v202, %v203
  %v205 = vrot.slane %v189, 2
  %v206 = vsel %vm50, %v203, %v205
  %v207 = vrot.slane %v199, 2
  %v208 = vrot.slane %v193, 2
  %v209 = vsel %vm50, %v207, %v208
  %v210 = vrot.slane %v192, 2
  %v211 = vsel %vm50, %v208, %v210
  %212 = vrot.lane.b32.xlu0 %v204, 8
  %v213 = vpop.permute.xlu0 %212
  %214 = vrot.lane.b32.xlu0 %v206, 8
  %v215 = vpop.permute.xlu0 %214
  %216 = vrot.lane.b32.xlu0 %v209, 8
  %v217 = vpop.permute.xlu0 %216
  %218 = vrot.lane.b32.xlu0 %v211, 8
  %v219 = vpop.permute.xlu0 %218
  %v224 = vrot.slane %v198, 4
  %v225 = vrot.slane %v190, 4
  %v226 = vsel %vm35, %v224, %v225
  %v227 = vrot.slane %v189, 4
  %v228 = vsel %vm35, %v225, %v227
  %v229 = vrot.slane %v199, 4
  %v230 = vrot.slane %v193, 4
  %v231 = vsel %vm35, %v229, %v230
  %v232 = vrot.slane %v192, 4
  %v233 = vsel %vm35, %v230, %v232
  %234 = vrot.lane.b32.xlu0 %v226, 16
  %v235 = vpop.permute.xlu0 %234
  %236 = vrot.lane.b32.xlu0 %v228, 16
  %v237 = vpop.permute.xlu0 %236
  %238 = vrot.lane.b32.xlu0 %v231, 16
  %v239 = vpop.permute.xlu0 %238
  %240 = vrot.lane.b32.xlu0 %v233, 16
  %v241 = vpop.permute.xlu0 %240
  %v246 = vsel %vm100, %v198, %v213
  %v247 = vsel %vm100, %v190, %v215
  %v248 = vsel %vm100, %v199, %v217
  %v249 = vsel %vm100, %v193, %v219
  %vm250 = vcmask 130048
  %v251 = vsel %vm250, %v246, %v235
  %v252 = vsel %vm250, %v247, %v237
  %v253 = vsel %vm250, %v248, %v239
  %v254 = vsel %vm250, %v249, %v241
  %v255 = vpack.c.bf16 %v252, %v251
  %v256 = vpack.c.bf16 %v254, %v253
  %v257 = vld [vmem:[%s3] sm:$0xf]
  %v258 = vld [vmem:[%s3 + $0x4] sm:$0xf]
  %v259 = vld [vmem:[%s3 + $0x8] sm:$0xf]
  %v260 = vld [vmem:[%s4] sm:$0x1]
  %v262 = vlaneseq
  %v263 = vshrl.u32 %v262, 7
  %v264 = vsub.s32 0, %v263
  %v265 = vrot.slane %v260, %v264
  %v270 = vunpack.c.l.b16 %v257
  %v271 = vunpack.c.l.b16 %v258
  %v272 = vunpack.c.l.b16 %v259
  %v273 = vpack.c.b16 %v271, %v270
  %v274 = vpack.c.b16 %v272, %v272
  %vm276 = vcmask 195584
  %v278 = vsel %vm276, %v255, 0
  %v281 = vsel %vm276, %v256, 0
  %v284 = vsel %vm35, %v274, 0
  %286 = vmatprep.subr.bf16.mxu0 0
  %287 = vmatpush1.bf16.msra.mxu0 0
  %288 = vmatprep.subr.bf16.mxu0 0
  %289 = vmatpush1.bf16.msra.mxu0 0
  %290 = vmatprep.subr.bf16.mxu0 0
  %291 = vmatpush1.bf16.msra.mxu0 0
  %292 = vmatprep.subr.bf16.mxu0 0
  %293 = vmatpush1.bf16.msra.mxu0 0
  %294 = vmatprep.subr.bf16.mxu0 0
  %295 = vmatpush1.bf16.msra.mxu0 0
  %296 = vmatprep.subr.bf16.mxu0 0
  %297 = vmatpush1.bf16.msra.mxu0 0
  %298 = vmatprep.subr.bf16.mxu0 0
  %299 = vmatpush1.bf16.msra.mxu0 %v284
  %300 = vmatprep.subr.bf16.mxu0 0
  %301 = vmatpush1.bf16.msra.mxu0 %v273
  %302 = vmatprep.subr.bf16.mxu0 0
  %303 = vmatpush2.bf16.msra.mxu0 0
  %304 = vmatprep.subr.bf16.mxu0 0
  %305 = vmatpush2.bf16.msra.mxu0 0
  %306 = vmatprep.subr.bf16.mxu0 0
  %307 = vmatpush2.bf16.msra.mxu0 0
  %308 = vmatprep.subr.bf16.mxu0 0
  %309 = vmatpush2.bf16.msra.mxu0 0
  %310 = vmatprep.subr.bf16.mxu0 0
  %311 = vmatpush2.bf16.msra.mxu0 0
  %312 = vmatprep.subr.bf16.mxu0 0
  %313 = vmatpush2.bf16.msra.mxu0 0
  %314 = vmatprep.subr.bf16.mxu0 0
  %315 = vmatpush2.bf16.msra.mxu0 0
  %316 = vmatprep.subr.bf16.mxu0 0
  %317 = vmatpush2.bf16.msra.mxu0 0
  %318 = vmatprep.mubr.bf16.mxu0 0
  %319 = vmatmul.mubr.bf16.gmra.mxu0 %v278
  %v320 = vpop.f32.mrf.mxu0
  %v321 = vadd.f32 %v265, %v320
  %v322 = vpop.f32.mrf.mxu0
  %v323 = vpop.f32.mrf.mxu0
  %v324 = vadd.f32 %v265, %v323
  %v325 = vpop.f32.mrf.mxu0
  %326 = vmatprep.mubr.bf16.mxu0 0
  %327 = vmatmul.mubr.bf16.gmra.mxu0 %v281
  %v328 = vpop.f32.mrf.mxu0
  %v329 = vadd.f32 %v265, %v328
  %v330 = vpop.f32.mrf.mxu0
  %v331 = vpop.f32.mrf.mxu0
  %v332 = vadd.f32 %v265, %v331
  %v333 = vpop.f32.mrf.mxu0
  %334 = vdwg.mxu0
  %v335 = vmax.f32 %v321, 0.0
  %v336 = vmax.f32 %v324, 0.0
  %v337 = vmax.f32 %v329, 0.0
  %v338 = vmax.f32 %v332, 0.0
  %v339 = vpack.c.bf16 %v28, %v27
  %v340 = vpack.c.bf16 %v30, %v29
  %v341 = vld [vmem:[%s5] sm:$0x3]
  %v342 = vld [vmem:[%s6] sm:$0x1]
  %v344 = vlaneseq
  %v345 = vshrl.u32 %v344, 7
  %v346 = vsub.s32 0, %v345
  %v347 = vrot.slane %v342, %v346
  %v350 = vsel %vm95, %v339, 0
  %v353 = vsel %vm95, %v340, 0
  %vm355 = vcmask 1041408
  %v357 = vsel %vm355, %v341, 0
  %359 = vmatprep.subr.bf16.mxu0 0
  %360 = vmatpush1.bf16.msra.mxu0 0
  %361 = vmatprep.subr.bf16.mxu0 0
  %362 = vmatpush1.bf16.msra.mxu0 0
  %363 = vmatprep.subr.bf16.mxu0 0
  %364 = vmatpush1.bf16.msra.mxu0 0
  %365 = vmatprep.subr.bf16.mxu0 0
  %366 = vmatpush1.bf16.msra.mxu0 0
  %367 = vmatprep.subr.bf16.mxu0 0
  %368 = vmatpush1.bf16.msra.mxu0 0
  %369 = vmatprep.subr.bf16.mxu0 0
  %370 = vmatpush1.bf16.msra.mxu0 0
  %371 = vmatprep.subr.bf16.mxu0 0
  %372 = vmatpush1.bf16.msra.mxu0 0
  %373 = vmatprep.subr.bf16.mxu0 0
  %374 = vmatpush1.bf16.msra.mxu0 %v357
  %375 = vmatprep.subr.bf16.mxu0 0
  %376 = vmatpush2.bf16.msra.mxu0 0
  %377 = vmatprep.subr.bf16.mxu0 0
  %378 = vmatpush2.bf16.msra.mxu0 0
  %379 = vmatprep.subr.bf16.mxu0 0
  %380 = vmatpush2.bf16.msra.mxu0 0
  %381 = vmatprep.subr.bf16.mxu0 0
  %382 = vmatpush2.bf16.msra.mxu0 0
  %383 = vmatprep.subr.bf16.mxu0 0
  %384 = vmatpush2.bf16.msra.mxu0 0
  %385 = vmatprep.subr.bf16.mxu0 0
  %386 = vmatpush2.bf16.msra.mxu0 0
  %387 = vmatprep.subr.bf16.mxu0 0
  %388 = vmatpush2.bf16.msra.mxu0 0
  %389 = vmatprep.subr.bf16.mxu0 0
  %390 = vmatpush2.bf16.msra.mxu0 0
  %391 = vmatprep.mubr.bf16.mxu0 0
  %392 = vmatmul.mubr.bf16.gmra.mxu0 %v350
  %v393 = vpop.f32.mrf.mxu0
  %v394 = vadd.f32 %v347, %v393
  %v395 = vpop.f32.mrf.mxu0
  %v396 = vpop.f32.mrf.mxu0
  %v397 = vadd.f32 %v347, %v396
  %v398 = vpop.f32.mrf.mxu0
  %399 = vmatprep.mubr.bf16.mxu0 0
  %400 = vmatmul.mubr.bf16.gmra.mxu0 %v353
  %v401 = vpop.f32.mrf.mxu0
  %v402 = vadd.f32 %v347, %v401
  %v403 = vpop.f32.mrf.mxu0
  %v404 = vpop.f32.mrf.mxu0
  %v405 = vadd.f32 %v347, %v404
  %v406 = vpop.f32.mrf.mxu0
  %407 = vdwg.mxu0
  %v408 = vadd.f32 %v335, %v394
  %v409 = vadd.f32 %v336, %v397
  %v410 = vadd.f32 %v337, %v402
  %v411 = vadd.f32 %v338, %v405
  %v412 = vmax.f32 %v408, 0.0
  %v413 = vmax.f32 %v409, 0.0
  %v414 = vmax.f32 %v410, 0.0
  %v415 = vmax.f32 %v411, 0.0
  %416 = vst.msk [vmem:[%s7] sm:$0xff] %vm100, %v412
  %417 = vst.msk [vmem:[%s7 + $0x8] sm:$0xff] %vm100, %v413
  %418 = vst.msk [vmem:[%s7 + $0x10] sm:$0xff] %vm100, %v414
  %419 = vst.msk [vmem:[%s7 + $0x18] sm:$0xff] %vm100, %v415
  // Predicated region
  $region30: #{temporal_block_forward.1} parent=0 // pred_check
    _
  $region31: #{temporal_block_forward.1} parent=0 // pred_check_branch
    %421 = sbr.rel (0) target = $region33
  $region32: #{temporal_block_forward.1} parent=0 // pred_region
    _
  $region33: #{temporal_block_forward.1} parent=0 // pred_fallthru
    _
  // Predicated region
  $region34: #{temporal_block_forward.1} parent=0 // pred_check
    _
  $region35: #{temporal_block_forward.1} parent=0 // pred_check_branch
    %423 = sbr.rel (0) target = $region37
  $region36: #{temporal_block_forward.1} parent=0 // pred_region
    _
  $region37: #{temporal_block_forward.1} parent=0 // pred_fallthru
    _

</llo_original>
